<compile_context>
chip_gen: v5e
topology: v5e:2x2
jax: 0.10.0
libtpu: 0.0.40
codegen_flags: <defaults>
</compile_context>

<pallas_src>
import jax
import jax.numpy as jnp
from jax.experimental import pallas as pl
from jax.experimental.pallas import tpu as pltpu


def _round_up(x, m):
    return (x + m - 1) // m * m


# ----------------------------- Pallas kernel ------------------------------ #
def _patch_proj_kernel(x_ref, w_ref, b_ref, o_ref):
    # x_ref: (tm, Kp) bf16   w_ref: (Kp, Ep) bf16   b_ref: (1, Ep) f32
    # o_ref: (tm, Ep) out_dtype
    acc = jnp.dot(x_ref[...], w_ref[...], preferred_element_type=jnp.float32)
    o_ref[...] = (acc + b_ref[...]).astype(o_ref.dtype)


def _patch_proj(xp, w, b, *, out_dtype, tm=None):
    """xp: (M, K) compute-dtype, w: (K, E) compute-dtype, b: (1, E) f32.

    Returns (M, E) in out_dtype. Handles K/E lane padding and M tiling.
    """
    M, K = xp.shape
    Kw, E = w.shape
    assert K == Kw and b.shape == (1, E)

    # Lane-dense padding: K and E up to multiples of 128.
    K_pad = _round_up(K, 128)
    E_pad = _round_up(E, 128)

    in_bytes = jnp.dtype(xp.dtype).itemsize
    out_bytes = jnp.dtype(out_dtype).itemsize

    # M-tile selection: start at 1024 rows, shrink to respect a conservative
    # VMEM budget (double-buffered x & out blocks + resident weights).
    if tm is None:
        budget = 24 * 1024 * 1024
        tm = 1024

        def step_bytes(t):
            return (2 * t * K_pad * in_bytes
                    + 2 * t * E_pad * out_bytes
                    + K_pad * E_pad * in_bytes
                    + E_pad * 4)

        while tm > 128 and step_bytes(tm) > budget:
            tm //= 2
        tm = min(tm, _round_up(M, 16))
    tm = max(16, _round_up(tm, 16))

    # Pad M so every block is full (no partial-block garbage rows on the MXU).
    M_pad = _round_up(M, tm)

    if (M_pad, K_pad) != (M, K):
        xp = jnp.pad(xp, ((0, M_pad - M), (0, K_pad - K)))
    if (K_pad, E_pad) != (K, E):
        w = jnp.pad(w, ((0, K_pad - K), (0, E_pad - E)))
    if E_pad != E:
        b = jnp.pad(b, ((0, 0), (0, E_pad - E)))

    # Scoped-VMEM limit with headroom; stays within v7x's 64 MiB physical VMEM.
    vmem_needed = (2 * tm * K_pad * in_bytes
                   + 2 * tm * E_pad * out_bytes
                   + K_pad * E_pad * in_bytes
                   + E_pad * 4)
    vmem_limit = int(min(max(2 * vmem_needed, 32 * 1024 * 1024),
                         64 * 1024 * 1024))

    grid = (M_pad // tm,)

    out = pl.pallas_call(
        _patch_proj_kernel,
        out_shape=jax.ShapeDtypeStruct((M_pad, E_pad), out_dtype),
        grid_spec=pltpu.PrefetchScalarGridSpec(
            num_scalar_prefetch=0,
            grid=grid,
            in_specs=[
                pl.BlockSpec((tm, K_pad), lambda i: (i, 0)),
                pl.BlockSpec((K_pad, E_pad), lambda i: (0, 0)),  # resident
                pl.BlockSpec((1, E_pad), lambda i: (0, 0)),      # resident
            ],
            out_specs=pl.BlockSpec((tm, E_pad), lambda i: (i, 0)),
        ),
        compiler_params=pltpu.CompilerParams(
            dimension_semantics=("parallel",),   # shards over v7x's 2 TCs
            vmem_limit_bytes=vmem_limit,
        ),
    )(xp, w, b)

    if (M_pad, E_pad) != (M, E):
        out = out[:M, :E]
    return out


# --------------------------- Module-level wrapper -------------------------- #
def patch_embed_3d(x, weight, bias, patch_size=(2, 4, 4), flatten=True,
                   compute_dtype=jnp.bfloat16, out_dtype=None, tm=None):
    """JAX/Pallas equivalent of PatchEmbed3D.forward (norm_layer=None).

    x:      (B, C, D, H, W)         -- NCDHW, same as PyTorch
    weight: (E, C, pd, ph, pw)      -- Conv3d weight layout
    bias:   (E,)
    returns (B, N, E) if flatten else (B, E, Dp, Hp, Wp)
    """
    if out_dtype is None:
        out_dtype = x.dtype
    pd, ph, pw = patch_size
    B, C, D, H, W = x.shape
    E = weight.shape[0]

    # Same zero-padding semantics as F.pad in the torch module.
    pad_w = (-W) % pw
    pad_h = (-H) % ph
    pad_d = (-D) % pd
    if pad_w or pad_h or pad_d:
        x = jnp.pad(x, ((0, 0), (0, 0), (0, pad_d), (0, pad_h), (0, pad_w)))
    D2, H2, W2 = D + pad_d, H + pad_h, W + pad_w
    Dp, Hp, Wp = D2 // pd, H2 // ph, W2 // pw

    # Patch extraction (glue, plain JAX). Done in the bf16 compute dtype so the
    # standalone rearrangement pass moves half the bytes.
    # (B, C, Dp, pd, Hp, ph, Wp, pw) -> (B, Dp, Hp, Wp, C, pd, ph, pw)
    # TODO(synk): fully fusing this rearrangement into the Pallas kernel (grid
    # over (b, dp, hp) with in-VMEM reshuffle) would remove one extra pass over
    # the input; kept out for robustness.
    xc = x.astype(compute_dtype)
    xp = xc.reshape(B, C, Dp, pd, Hp, ph, Wp, pw)
    xp = xp.transpose(0, 2, 4, 6, 1, 3, 5, 7)
    K = C * pd * ph * pw
    M = B * Dp * Hp * Wp
    xp = xp.reshape(M, K)

    # Conv weight -> dense projection matrix (K, E); K ordering (c, i, j, k)
    # matches the patch flattening above, so this is exactly the strided conv.
    w = weight.reshape(E, K).T.astype(compute_dtype)
    b = bias.astype(jnp.float32).reshape(1, E)

    out = _patch_proj(xp, w, b, out_dtype=out_dtype, tm=tm)  # (M, E)

    out = out.reshape(B, Dp, Hp, Wp, E)
    if flatten:
        # matches x.flatten(2).transpose(1, 2): token order is (d, h, w)
        return out.reshape(B, Dp * Hp * Wp, E)
    # matches the non-flatten branch: (B, E, Dp, Hp, Wp)
    return out.transpose(0, 4, 1, 2, 3)

    # TODO(synk): norm_layer is None in the default config; LayerNorm branch
    # not implemented here.


# ---------------------------------- main ----------------------------------- #
if __name__ == "__main__":
    key = jax.random.PRNGKey(0)
    k_x, k_w, k_b = jax.random.split(key, 3)

    # Small shapes consistent with the module defaults (in_chans=4 variant).
    B, C, D, H, W = 2, 4, 4, 16, 16
    patch_size = (2, 4, 4)
    embed_dim = 32

    x = jax.random.normal(k_x, (B, C, D, H, W), dtype=jnp.float32)
    weight = jax.random.normal(
        k_w, (embed_dim, C) + patch_size, dtype=jnp.float32) * 0.02
    bias = jax.random.normal(k_b, (embed_dim,), dtype=jnp.float32) * 0.02

    out = patch_embed_3d(x, weight, bias, patch_size=patch_size, flatten=True)
    out = jax.block_until_ready(out)

    # Sanity check against a pure-JAX f32 reference (strided conv via einsum).
    # GEMM runs in bf16 with f32 accumulation, so use a loosened tolerance.
    pd, ph, pw = patch_size
    Dp, Hp, Wp = D // pd, H // ph, W // pw
    xr = x.reshape(B, C, Dp, pd, Hp, ph, Wp, pw)
    ref = jnp.einsum("bcdihjwk,ecijk->bdhwe", xr, weight) + bias
    ref = ref.reshape(B, Dp * Hp * Wp, embed_dim)
    assert out.shape == (B, Dp * Hp * Wp, embed_dim)
    assert out.dtype == x.dtype
    assert jnp.allclose(out, ref, atol=2e-2, rtol=2e-2)

    print("KERNEL_OK")
</pallas_src>

<mosaic_0001>
module attributes {stable_mosaic.version = 11 : i64} {
  func.func @_patch_proj_kernel(%arg0: i32, %arg1: memref<64x128xbf16, #tpu.memory_space<vmem>>, %arg2: memref<128x128xbf16, #tpu.memory_space<vmem>>, %arg3: memref<1x128xf32, #tpu.memory_space<vmem>>, %arg4: memref<64x128xf32, #tpu.memory_space<vmem>>) attributes {dimension_semantics = [#tpu.dimension_semantics<parallel>], iteration_bounds = array<i64: 1>, scalar_prefetch = 0 : i64, scratch_operands = 0 : i64, tpu.core_type = #tpu.core_type<tc>, window_params = [{transform_indices = @transform_0, window_bounds = array<i64: 64, 128>}, {pipeline_mode = #tpu.pipeline_mode<synchronous>, transform_indices = @transform_1, window_bounds = array<i64: 128, 128>}, {pipeline_mode = #tpu.pipeline_mode<synchronous>, transform_indices = @transform_2, window_bounds = array<i64: 1, 128>}, {transform_indices = @transform_3, window_bounds = array<i64: 64, 128>}]} {
    %c0 = arith.constant 0 : index
    %c0_0 = arith.constant 0 : index
    %0 = vector.load %arg1[%c0, %c0_0] : memref<64x128xbf16, #tpu.memory_space<vmem>>, vector<64x128xbf16>
    %c0_1 = arith.constant 0 : index
    %c0_2 = arith.constant 0 : index
    %1 = vector.load %arg2[%c0_1, %c0_2] : memref<128x128xbf16, #tpu.memory_space<vmem>>, vector<128x128xbf16>
    %cst = arith.constant dense<0.000000e+00> : vector<64x128xf32>
    %2 = tpu.matmul %0, %1, %cst {dimension_numbers = #tpu.dot_dimension_numbers<[1], [0], [0], [1], [0, 0, 1, 1], [], []>} : vector<64x128xbf16>, vector<128x128xbf16>, vector<64x128xf32> -> vector<64x128xf32>
    %c0_3 = arith.constant 0 : index
    %c0_4 = arith.constant 0 : index
    %3 = vector.load %arg3[%c0_3, %c0_4] : memref<1x128xf32, #tpu.memory_space<vmem>>, vector<1x128xf32>
    %4 = vector.broadcast %3 : vector<1x128xf32> to vector<64x128xf32>
    %5 = arith.addf %2, %4 : vector<64x128xf32>
    %c0_5 = arith.constant 0 : index
    %c0_6 = arith.constant 0 : index
    %6 = vector.load %arg4[%c0_5, %c0_6] : memref<64x128xf32, #tpu.memory_space<vmem>>, vector<64x128xf32>
    tpu.vector_store %arg4[%c0_5, %c0_6], %5 {strides = array<i32>} : memref<64x128xf32, #tpu.memory_space<vmem>>, vector<64x128xf32>,
    return
  }
  func.func @transform_0(%arg0: i32) -> (i32, i32) {
    %c0_i32 = arith.constant 0 : i32
    %c0_i32_0 = arith.constant 0 : i32
    return %arg0, %c0_i32 : i32, i32
  }
  func.func @transform_1(%arg0: i32) -> (i32, i32) {
    %c0_i32 = arith.constant 0 : i32
    %c0_i32_0 = arith.constant 0 : i32
    %c0_i32_1 = arith.constant 0 : i32
    return %c0_i32, %c0_i32_0 : i32, i32
  }
  func.func @transform_2(%arg0: i32) -> (i32, i32) {
    %c0_i32 = arith.constant 0 : i32
    %c0_i32_0 = arith.constant 0 : i32
    %c0_i32_1 = arith.constant 0 : i32
    return %c0_i32, %c0_i32_0 : i32, i32
  }
  func.func @transform_3(%arg0: i32) -> (i32, i32) {
    %c0_i32 = arith.constant 0 : i32
    %c0_i32_0 = arith.constant 0 : i32
    return %arg0, %c0_i32 : i32, i32
  }
}

</mosaic_0001>

<llo_original>
// kernel: tpu_custom_call.1
$region0: #{tpu_custom_call.1}
  #allocation0 [shape = 'u32[]', space=smem, size = 0x4, offset = 0x4, fixed_abs, tag = 'smem constant byte address 0x4 - core index']
  #allocation1 [shape = 'u32[72,128]{1,0:T(1,128)}', space=vmem, size = 0x9000, scoped, tag = 'internal scratch']
  %s0 = inlined_call_operand.hbm [shape: bf16[64,128], index: 0, kind: input, shape index: {}]
  %s1 = inlined_call_operand.hbm [shape: bf16[128,128], index: 1, kind: input, shape index: {}]
  %s2 = inlined_call_operand.vmem [shape: f32[1,128], index: 2, kind: input, shape index: {}]
  %s3 = inlined_call_operand.hbm [shape: f32[64,128], index: 3, kind: output, shape index: {}]
  %s4 = sld [smem:[#allocation0]]
  $region30: #{tpu_custom_call.1} parent=0
    _
  %s6 = ssub.s32 1, %s4
  %s7 = scalar_select 0, %s6, %s4
  $region1: #{tpu_custom_call.1} parent=0
    #allocation2 [shape = 'u8[16384]{0}', space=vmem, size = 0x4000, scoped, tag = 'input window, operand 0, single buffered']
    #allocation3 [shape = 's32[1]{0}', space=sflag, size = 0x4, scoped, tag = 'scoped memory for tpu_custom_call.1']
    #allocation4 [shape = 's32[1]{0}', space=sflag, size = 0x4, scoped, tag = 'scoped memory for tpu_custom_call.1']
    #allocation5 [shape = 'u8[32768]{0}', space=vmem, size = 0x8000, scoped, tag = 'input window, operand 1, single buffered']
    #allocation6 [shape = 's32[1]{0}', space=sflag, size = 0x4, scoped, tag = 'scoped memory for tpu_custom_call.1']
    #allocation7 [shape = 'u8[32768]{0}', space=vmem, size = 0x8000, scoped, tag = 'output window, operand 0, single buffered']
    %8 = vsyncpa [#allocation3], 0
    %9 = vsyncpa [#allocation6], 0
    %10 = vsyncpa [#allocation4], 0
    // Predicated region
    $region2: #{tpu_custom_call.1} parent=1 // pred_check
      _
    $region3: #{tpu_custom_call.1} parent=1 // pred_check_branch
      %12 = sbr.rel (0) target = $region5
    $region4: #{tpu_custom_call.1} parent=1 // pred_region
      %14 = vsyncadd [#allocation3], 0
      %s15 = sshll.u32 %s0, 4
      %s16 = int_to_ptr.hbm [resolvable:$true] %s15
      %s17 = sshll.u32 [#allocation2], 4
      %s18 = int_to_ptr.vmem [resolvable:$true] %s17
      %23 = dma.hbm_to_vmem [thread:$0]  %s16, 512, %s18, [#allocation3], 64, 64, 4
    $region5: #{tpu_custom_call.1} parent=1 // pred_fallthru
      _
    // Predicated region
    $region6: #{tpu_custom_call.1} parent=1 // pred_check
      _
    $region7: #{tpu_custom_call.1} parent=1 // pred_check_branch
      %25 = sbr.rel (0) target = $region9
    $region8: #{tpu_custom_call.1} parent=1 // pred_region
      %27 = vsyncadd [#allocation6], 0
      %s28 = sshll.u32 %s1, 4
      %s29 = int_to_ptr.hbm [resolvable:$true] %s28
      %s30 = sshll.u32 [#allocation5], 4
      %s31 = int_to_ptr.vmem [resolvable:$true] %s30
      %36 = dma.hbm_to_vmem [thread:$0]  %s29, 1024, %s31, [#allocation6], 64, 64, 4
    $region9: #{tpu_custom_call.1} parent=1 // pred_fallthru
      _
    // Predicated region
    $region10: #{tpu_custom_call.1} parent=1 // pred_check
      _
    $region11: #{tpu_custom_call.1} parent=1 // pred_check_branch
      %38 = sbr.rel (0) target = $region13
    $region12: #{tpu_custom_call.1} parent=1 // pred_region
      _
    $region13: #{tpu_custom_call.1} parent=1 // pred_fallthru
      _
    // Predicated region
    $region14: #{tpu_custom_call.1} parent=1 // pred_check
      _
    $region15: #{tpu_custom_call.1} parent=1 // pred_check_branch
      %40 = sbr.rel (0) target = $region17
    $region16: #{tpu_custom_call.1} parent=1 // pred_region
      %42 = dma.done [#allocation3], 512
    $region17: #{tpu_custom_call.1} parent=1 // pred_fallthru
      _
    // Predicated region
    $region18: #{tpu_custom_call.1} parent=1 // pred_check
      _
    $region19: #{tpu_custom_call.1} parent=1 // pred_check_branch
      %44 = sbr.rel (0) target = $region21
    $region20: #{tpu_custom_call.1} parent=1 // pred_region
      %46 = dma.done [#allocation6], 1024
    $region21: #{tpu_custom_call.1} parent=1 // pred_fallthru
      _
    %v47 = vld [vmem:[#allocation2] sm:$0xf]
    %v48 = vld [vmem:[#allocation2 + $0x4] sm:$0xf]
    %v49 = vld [vmem:[#allocation2 + $0x8] sm:$0xf]
    %v50 = vld [vmem:[#allocation2 + $0xc] sm:$0xf]
    %v51 = vld [vmem:[#allocation2 + $0x10] sm:$0xf]
    %v52 = vld [vmem:[#allocation2 + $0x14] sm:$0xf]
    %v53 = vld [vmem:[#allocation2 + $0x18] sm:$0xf]
    %v54 = vld [vmem:[#allocation2 + $0x1c] sm:$0xf]
    %v55 = vld [vmem:[#allocation5] sm:$0xf]
    %v56 = vld [vmem:[#allocation5 + $0x4] sm:$0xf]
    %v57 = vld [vmem:[#allocation5 + $0x8] sm:$0xf]
    %v58 = vld [vmem:[#allocation5 + $0xc] sm:$0xf]
    %v59 = vld [vmem:[#allocation5 + $0x10] sm:$0xf]
    %v60 = vld [vmem:[#allocation5 + $0x14] sm:$0xf]
    %v61 = vld [vmem:[#allocation5 + $0x18] sm:$0xf]
    %v62 = vld [vmem:[#allocation5 + $0x1c] sm:$0xf]
    %v63 = vld [vmem:[#allocation5 + $0x20] sm:$0xf]
    %v64 = vld [vmem:[#allocation5 + $0x24] sm:$0xf]
    %v65 = vld [vmem:[#allocation5 + $0x28] sm:$0xf]
    %v66 = vld [vmem:[#allocation5 + $0x2c] sm:$0xf]
    %v67 = vld [vmem:[#allocation5 + $0x30] sm:$0xf]
    %v68 = vld [vmem:[#allocation5 + $0x34] sm:$0xf]
    %v69 = vld [vmem:[#allocation5 + $0x38] sm:$0xf]
    %v70 = vld [vmem:[#allocation5 + $0x3c] sm:$0xf]
    %v71 = vld [vmem:[%s2] sm:$0x1]
    %v73 = vperm.slane %v71, 0
    %v83 = vunpack.c.l.b16 %v47
    %v84 = vunpack.c.l.b16 %v48
    %v85 = vunpack.c.l.b16 %v49
    %v86 = vunpack.c.l.b16 %v50
    %v87 = vunpack.c.l.b16 %v51
    %v88 = vunpack.c.l.b16 %v52
    %v89 = vunpack.c.l.b16 %v53
    %v90 = vunpack.c.l.b16 %v54
    %v91 = vpack.c.b16 %v84, %v83
    %v92 = vpack.c.b16 %v86, %v85
    %v93 = vpack.c.b16 %v88, %v87
    %v94 = vpack.c.b16 %v90, %v89
    %v115 = vunpack.c.l.b16 %v55
    %v116 = vunpack.c.l.b16 %v56
    %v117 = vunpack.c.l.b16 %v57
    %v118 = vunpack.c.l.b16 %v58
    %v119 = vunpack.c.l.b16 %v59
    %v120 = vunpack.c.l.b16 %v60
    %v121 = vunpack.c.l.b16 %v61
    %v122 = vunpack.c.l.b16 %v62
    %v123 = vunpack.c.l.b16 %v63
    %v124 = vunpack.c.l.b16 %v64
    %v125 = vunpack.c.l.b16 %v65
    %v126 = vunpack.c.l.b16 %v66
    %v127 = vunpack.c.l.b16 %v67
    %v128 = vunpack.c.l.b16 %v68
    %v129 = vunpack.c.l.b16 %v69
    %v130 = vunpack.c.l.b16 %v70
    %v131 = vpack.c.b16 %v116, %v115
    %v132 = vpack.c.b16 %v118, %v117
    %v133 = vpack.c.b16 %v120, %v119
    %v134 = vpack.c.b16 %v122, %v121
    %v135 = vpack.c.b16 %v124, %v123
    %v136 = vpack.c.b16 %v126, %v125
    %v137 = vpack.c.b16 %v128, %v127
    %v138 = vpack.c.b16 %v130, %v129
    %147 = vmatpush.bf16.msra.mxu0 %v138
    %148 = vmatpush.bf16.msra.mxu0 %v137
    %149 = vmatpush.bf16.msra.mxu0 %v136
    %150 = vmatpush.bf16.msra.mxu0 %v135
    %151 = vmatpush.bf16.msra.mxu0 %v134
    %152 = vmatpush.bf16.msra.mxu0 %v133
    %153 = vmatpush.bf16.msra.mxu0 %v132
    %154 = vmatpush.bf16.msra.mxu0 %v131
    %155 = vmatmul.bf16.gmra.mxu0 %v91
    %v156 = vpop.f32.mrf.mxu0
    %v157 = vadd.f32 %v73, %v156
    %v158 = vpop.f32.mrf.mxu0
    %v159 = vadd.f32 %v73, %v158
    %160 = vmatmul.bf16.gmra.mxu0 %v92
    %v161 = vpop.f32.mrf.mxu0
    %v162 = vadd.f32 %v73, %v161
    %v163 = vpop.f32.mrf.mxu0
    %v164 = vadd.f32 %v73, %v163
    %165 = vmatmul.bf16.gmra.mxu0 %v93
    %v166 = vpop.f32.mrf.mxu0
    %v167 = vadd.f32 %v73, %v166
    %v168 = vpop.f32.mrf.mxu0
    %v169 = vadd.f32 %v73, %v168
    %170 = vmatmul.bf16.gmra.mxu0 %v94
    %v171 = vpop.f32.mrf.mxu0
    %v172 = vadd.f32 %v73, %v171
    %v173 = vpop.f32.mrf.mxu0
    %v174 = vadd.f32 %v73, %v173
    %175 = vdwg.mxu0
    %176 = vst [vmem:[#allocation7] sm:$0xff] %v157
    %177 = vst [vmem:[#allocation7 + $0x8] sm:$0xff] %v159
    %178 = vst [vmem:[#allocation7 + $0x10] sm:$0xff] %v162
    %179 = vst [vmem:[#allocation7 + $0x18] sm:$0xff] %v164
    %180 = vst [vmem:[#allocation7 + $0x20] sm:$0xff] %v167
    %181 = vst [vmem:[#allocation7 + $0x28] sm:$0xff] %v169
    %182 = vst [vmem:[#allocation7 + $0x30] sm:$0xff] %v172
    %183 = vst [vmem:[#allocation7 + $0x38] sm:$0xff] %v174
    // Predicated region
    $region22: #{tpu_custom_call.1} parent=1 // pred_check
      _
    $region23: #{tpu_custom_call.1} parent=1 // pred_check_branch
      %185 = sbr.rel (0) target = $region25
    $region24: #{tpu_custom_call.1} parent=1 // pred_region
      %187 = vsyncadd [#allocation4], 0
      %s188 = sshll.u32 [#allocation7], 4
      %s189 = int_to_ptr.vmem [resolvable:$true] %s188
      %s190 = sshll.u32 %s3, 4
      %s191 = int_to_ptr.hbm [resolvable:$true] %s190
      %196 = dma.vmem_to_hbm [thread:$0]  %s189, 1024, %s191, [#allocation4], 128, 128, 8
    $region25: #{tpu_custom_call.1} parent=1 // pred_fallthru
      _
    // Predicated region
    $region26: #{tpu_custom_call.1} parent=1 // pred_check
      _
    $region27: #{tpu_custom_call.1} parent=1 // pred_check_branch
      %198 = sbr.rel (0) target = $region29
    $region28: #{tpu_custom_call.1} parent=1 // pred_region
      %200 = dma.done [#allocation4], 1024
    $region29: #{tpu_custom_call.1} parent=1 // pred_fallthru
      _
    %201 = vsyncpa [#allocation3], 1
    %202 = vsyncpa [#allocation6], 1
    %203 = vsyncpa [#allocation4], 1

</llo_original>
